<compile_context>
chip_gen: v5e
topology: v5e:2x2
jax: 0.10.0
libtpu: 0.0.40
codegen_flags: <defaults>
</compile_context>

<pallas_src>
from functools import partial

import numpy as np
import jax
import jax.numpy as jnp
from jax import lax
from jax.experimental import pallas as pl
from jax.experimental.pallas import tpu as pltpu

_EPS = 1e-5


# ----------------------------------------------------------------------------
# Fused Pallas kernel: maxpool2x2 -> (BN,ReLU,conv)x2 + (BN,ReLU,conv) shortcut
# ----------------------------------------------------------------------------
def _en_conv_kernel(x_ref, s1_ref, t1_ref, w1_ref, b1_ref,
                    s2_ref, t2_ref, w2_ref, b2_ref,
                    ss_ref, ts_ref, ws_ref, bs_ref,
                    o_ref, pada_ref, padb_ref, *, Ho, Wo):
    # x_ref:   (1, 2, 2, Cin, S)   pool-corner layout, S = Ho*Wo (one image)
    # s*/t*:   (C, 1)              folded BatchNorm scale/shift (f32)
    # w*:      (Cout, 9*C)         im2col conv weights, K order (ky, kx, ci)
    # b*:      (Cout, 1)           conv bias (f32)
    # o_ref:   (1, Cout, S)        channel-major output (lane-dense store)
    # pad*_ref: (C, L) VMEM scratch, L = (Ho+2)*Wo + 2: flat activation padded
    #           by one zero ROW above/below plus a 1-element guard at each end.
    S = Ho * Wo

    # ---- MaxPool2d(2): the 4 window corners are separate leading indices of
    # the pool-corner layout -> 3 VPU maximums, no relayout.
    pooled = jnp.maximum(
        jnp.maximum(x_ref[0, 0, 0], x_ref[0, 0, 1]),
        jnp.maximum(x_ref[0, 1, 0], x_ref[0, 1, 1]))          # (Cin, S) f32

    # Lane masks killing the row-wrap reads of the flat width-shifted windows:
    # kx=0 needs column j-1  -> must be 0 at j == 0
    # kx=2 needs column j+1  -> must be 0 at j == Wo-1
    col = lax.broadcasted_iota(jnp.int32, (1, S), 1) % Wo
    m_kx0 = (col != 0).astype(jnp.float32)
    m_kx2 = (col != Wo - 1).astype(jnp.float32)

    def conv3x3(pad_ref, w_ref, b_ref):
        # Tap (ky, kx) window of the flat height-padded buffer starts at
        # ky*Wo + kx (interior starts at Wo+1, guards absorb the +/-1 shifts).
        blocks = []
        for ky in range(3):
            for kx in range(3):
                start = ky * Wo + kx
                win = pad_ref[:, start:start + S]              # (C, S) f32
                if kx == 0:
                    win = win * m_kx0
                elif kx == 2:
                    win = win * m_kx2
                blocks.append(win)
        # K concat is along sublanes (not the 128-lane minor), then one
        # im2col matmul per conv: (Cout, 9C) @ (9C, S), bf16 in / f32 acc.
        rhs = jnp.concatenate(blocks, axis=0).astype(jnp.bfloat16)
        return jnp.dot(w_ref[...], rhs,
                       preferred_element_type=jnp.float32) + b_ref[...]

    def zero_border(pad_ref):
        # Only the zero-padding rows + guards: O(Wo) per channel per step
        # (interior [Wo+1 : Wo+1+S] is fully overwritten below).
        c = pad_ref.shape[0]
        z = jnp.zeros((c, Wo + 1), pad_ref.dtype)
        pad_ref[:, :Wo + 1] = z
        pad_ref[:, Wo + 1 + S:] = z

    zero_border(pada_ref)
    zero_border(padb_ref)

    # ---- double_conv, conv #1:  y1 = Conv(ReLU(BN1(pooled)))
    pada_ref[:, Wo + 1:Wo + 1 + S] = jnp.maximum(
        pooled * s1_ref[...] + t1_ref[...], 0.0)
    y1 = conv3x3(pada_ref, w1_ref, b1_ref)                    # (Cout, S)

    # ---- shortcut:              ys = Conv(ReLU(BNs(pooled)))  (reuse scratch)
    pada_ref[:, Wo + 1:Wo + 1 + S] = jnp.maximum(
        pooled * ss_ref[...] + ts_ref[...], 0.0)
    ysc = conv3x3(pada_ref, ws_ref, bs_ref)                   # (Cout, S)

    # ---- double_conv, conv #2:  y2 = Conv(ReLU(BN2(y1)))
    padb_ref[:, Wo + 1:Wo + 1 + S] = jnp.maximum(
        y1 * s2_ref[...] + t2_ref[...], 0.0)
    y2 = conv3x3(padb_ref, w2_ref, b2_ref)                    # (Cout, S)

    # ---- residual add, in-register; lane-dense channel-major store.
    o_ref[0] = y2 + ysc


# ----------------------------------------------------------------------------
# Parameter preprocessing + wrapper
# ----------------------------------------------------------------------------
def _fold_bn(gamma, beta, mean, var):
    scale = (gamma / jnp.sqrt(var + _EPS)).astype(jnp.float32)
    shift = (beta - mean * scale).astype(jnp.float32)
    return scale.reshape(-1, 1), shift.reshape(-1, 1)


def _im2col_weights(w_oihw):
    # (Cout, Cin, 3, 3) -> (Cout, 9*Cin) bf16, K ordered (ky, kx, ci)
    co, ci = w_oihw.shape[:2]
    return (jnp.transpose(w_oihw, (0, 2, 3, 1))
            .reshape(co, 9 * ci).astype(jnp.bfloat16))


def en_conv_forward(x_nchw, p):
    """Pallas implementation of en_conv.forward (NCHW in, NCHW out)."""
    N, Cin, H, W = x_nchw.shape
    assert H % 2 == 0 and W % 2 == 0
    Ho, Wo = H // 2, W // 2
    S = Ho * Wo
    L = (Ho + 2) * Wo + 2
    Cout = p["w1"].shape[0]

    # Pool-corner layout with the flat spatial dim innermost (lane-dense DMA):
    #   x6[n, a, b, c, i*Wo + j] == x[n, c, 2i + a, 2j + b]
    x6 = jnp.transpose(x_nchw.reshape(N, Cin, Ho, 2, Wo, 2),
                       (0, 3, 5, 1, 2, 4)).reshape(N, 2, 2, Cin, S)

    s1, t1 = _fold_bn(*p["bn1"])
    s2, t2 = _fold_bn(*p["bn2"])
    ss, ts = _fold_bn(*p["bns"])
    w1 = _im2col_weights(p["w1"])
    w2 = _im2col_weights(p["w2"])
    ws = _im2col_weights(p["ws"])
    b1 = p["b1"].reshape(-1, 1).astype(jnp.float32)
    b2 = p["b2"].reshape(-1, 1).astype(jnp.float32)
    bs = p["bs"].reshape(-1, 1).astype(jnp.float32)

    def rep(arr):
        nd = arr.ndim
        return pl.BlockSpec(arr.shape, lambda n, _nd=nd: (0,) * _nd)

    out_flat = pl.pallas_call(
        partial(_en_conv_kernel, Ho=Ho, Wo=Wo),
        out_shape=jax.ShapeDtypeStruct((N, Cout, S), jnp.float32),
        grid_spec=pltpu.PrefetchScalarGridSpec(
            num_scalar_prefetch=0,
            grid=(N,),
            in_specs=[
                pl.BlockSpec((1, 2, 2, Cin, S), lambda n: (n, 0, 0, 0, 0)),
                rep(s1), rep(t1), rep(w1), rep(b1),     # bn1, w1, b1
                rep(s2), rep(t2), rep(w2), rep(b2),     # bn2, w2, b2
                rep(ss), rep(ts), rep(ws), rep(bs),     # bns, ws, bs
            ],
            out_specs=pl.BlockSpec((1, Cout, S), lambda n: (n, 0, 0)),
            scratch_shapes=[
                pltpu.VMEM((Cin, L), jnp.float32),
                pltpu.VMEM((Cout, L), jnp.float32),
            ]),
        compiler_params=pltpu.CompilerParams(
            dimension_semantics=("parallel",),
            vmem_limit_bytes=32 * 1024 * 1024),
    )(x6, s1, t1, w1, b1, s2, t2, w2, b2, ss, ts, ws, bs)

    # Free metadata reshape only — no wrapper transpose of the output.
    return out_flat.reshape(N, Cout, Ho, Wo)


# ----------------------------------------------------------------------------
# Pure-JAX reference (for verification)
# ----------------------------------------------------------------------------
def _ref_conv(a_nhwc, w_oihw, b):
    y = lax.conv_general_dilated(
        a_nhwc, jnp.transpose(w_oihw, (2, 3, 1, 0)), (1, 1),
        ((1, 1), (1, 1)), dimension_numbers=("NHWC", "HWIO", "NHWC"),
        precision=lax.Precision.HIGHEST)
    return y + b


def _ref_bnrelu(a, bn):
    gamma, beta, mean, var = bn
    return jnp.maximum((a - mean) / jnp.sqrt(var + _EPS) * gamma + beta, 0.0)


def en_conv_reference(x_nchw, p):
    x = jnp.transpose(x_nchw, (0, 2, 3, 1))
    x = lax.reduce_window(x, -jnp.inf, lax.max, (1, 2, 2, 1), (1, 2, 2, 1),
                          "VALID")
    a1 = _ref_conv(_ref_bnrelu(x, p["bn1"]), p["w1"], p["b1"])
    a2 = _ref_conv(_ref_bnrelu(a1, p["bn2"]), p["w2"], p["b2"])
    sc = _ref_conv(_ref_bnrelu(x, p["bns"]), p["ws"], p["bs"])
    return jnp.transpose(a2 + sc, (0, 3, 1, 2))


# ----------------------------------------------------------------------------
# Main
# ----------------------------------------------------------------------------
def _init_params(key, cin, cout):
    ks = jax.random.split(key, 20)

    def bn(k, c):
        k1, k2, k3, k4 = jax.random.split(k, 4)
        gamma = 1.0 + 0.1 * jax.random.normal(k1, (c,), jnp.float32)
        beta = 0.1 * jax.random.normal(k2, (c,), jnp.float32)
        mean = 0.1 * jax.random.normal(k3, (c,), jnp.float32)
        var = 0.5 + jnp.abs(jax.random.normal(k4, (c,), jnp.float32)) * 0.5
        return (gamma, beta, mean, var)

    return {
        "bn1": bn(ks[0], cin),
        "w1": 0.2 * jax.random.normal(ks[1], (cout, cin, 3, 3), jnp.float32),
        "b1": 0.1 * jax.random.normal(ks[2], (cout,), jnp.float32),
        "bn2": bn(ks[3], cout),
        "w2": 0.2 * jax.random.normal(ks[4], (cout, cout, 3, 3), jnp.float32),
        "b2": 0.1 * jax.random.normal(ks[5], (cout,), jnp.float32),
        "bns": bn(ks[6], cin),
        "ws": 0.2 * jax.random.normal(ks[7], (cout, cin, 3, 3), jnp.float32),
        "bs": 0.1 * jax.random.normal(ks[8], (cout,), jnp.float32),
    }


if __name__ == "__main__":
    key = jax.random.PRNGKey(0)
    kx, kp = jax.random.split(key)

    N, Cin, Cout, H, W = 2, 4, 8, 16, 16
    x = jax.random.normal(kx, (N, Cin, H, W), jnp.float32)
    params = _init_params(kp, Cin, Cout)

    out = jax.block_until_ready(jax.jit(en_conv_forward)(x, params))
    ref = jax.block_until_ready(en_conv_reference(x, params))

    assert out.shape == (N, Cout, H // 2, W // 2), out.shape
    # bf16 MXU inputs with f32 accumulation -> tolerance loosened accordingly.
    np.testing.assert_allclose(np.asarray(out), np.asarray(ref),
                               rtol=5e-2, atol=5e-2)

    print("KERNEL_OK")
</pallas_src>

<mosaic_0001>
module attributes {stable_mosaic.version = 11 : i64} {
  func.func @_en_conv_kernel(%arg0: i32, %arg1: memref<1x2x2x4x64xf32, #tpu.memory_space<vmem>>, %arg2: memref<4x1xf32, #tpu.memory_space<vmem>>, %arg3: memref<4x1xf32, #tpu.memory_space<vmem>>, %arg4: memref<8x36xbf16, #tpu.memory_space<vmem>>, %arg5: memref<8x1xf32, #tpu.memory_space<vmem>>, %arg6: memref<8x1xf32, #tpu.memory_space<vmem>>, %arg7: memref<8x1xf32, #tpu.memory_space<vmem>>, %arg8: memref<8x72xbf16, #tpu.memory_space<vmem>>, %arg9: memref<8x1xf32, #tpu.memory_space<vmem>>, %arg10: memref<4x1xf32, #tpu.memory_space<vmem>>, %arg11: memref<4x1xf32, #tpu.memory_space<vmem>>, %arg12: memref<8x36xbf16, #tpu.memory_space<vmem>>, %arg13: memref<8x1xf32, #tpu.memory_space<vmem>>, %arg14: memref<1x8x64xf32, #tpu.memory_space<vmem>>, %arg15: memref<4x82xf32, #tpu.memory_space<vmem>>, %arg16: memref<8x82xf32, #tpu.memory_space<vmem>>) attributes {dimension_semantics = [#tpu.dimension_semantics<parallel>], iteration_bounds = array<i64: 2>, scalar_prefetch = 0 : i64, scratch_operands = 2 : i64, tpu.core_type = #tpu.core_type<tc>, window_params = [{transform_indices = @transform_0, window_bounds = array<i64: 1, 2, 2, 4, 64>}, {pipeline_mode = #tpu.pipeline_mode<synchronous>, transform_indices = @transform_1, window_bounds = array<i64: 4, 1>}, {pipeline_mode = #tpu.pipeline_mode<synchronous>, transform_indices = @transform_2, window_bounds = array<i64: 4, 1>}, {pipeline_mode = #tpu.pipeline_mode<synchronous>, transform_indices = @transform_3, window_bounds = array<i64: 8, 36>}, {pipeline_mode = #tpu.pipeline_mode<synchronous>, transform_indices = @transform_4, window_bounds = array<i64: 8, 1>}, {pipeline_mode = #tpu.pipeline_mode<synchronous>, transform_indices = @transform_5, window_bounds = array<i64: 8, 1>}, {pipeline_mode = #tpu.pipeline_mode<synchronous>, transform_indices = @transform_6, window_bounds = array<i64: 8, 1>}, {pipeline_mode = #tpu.pipeline_mode<synchronous>, transform_indices = @transform_7, window_bounds = array<i64: 8, 72>}, {pipeline_mode = #tpu.pipeline_mode<synchronous>, transform_indices = @transform_8, window_bounds = array<i64: 8, 1>}, {pipeline_mode = #tpu.pipeline_mode<synchronous>, transform_indices = @transform_9, window_bounds = array<i64: 4, 1>}, {pipeline_mode = #tpu.pipeline_mode<synchronous>, transform_indices = @transform_10, window_bounds = array<i64: 4, 1>}, {pipeline_mode = #tpu.pipeline_mode<synchronous>, transform_indices = @transform_11, window_bounds = array<i64: 8, 36>}, {pipeline_mode = #tpu.pipeline_mode<synchronous>, transform_indices = @transform_12, window_bounds = array<i64: 8, 1>}, {transform_indices = @transform_13, window_bounds = array<i64: 1, 8, 64>}]} {
    %c0 = arith.constant 0 : index
    %c0_0 = arith.constant 0 : index
    %c0_1 = arith.constant 0 : index
    %c0_2 = arith.constant 0 : index
    %c0_3 = arith.constant 0 : index
    %0 = vector.load %arg1[%c0, %c0_0, %c0_1, %c0_2, %c0_3] : memref<1x2x2x4x64xf32, #tpu.memory_space<vmem>>, vector<1x1x1x4x64xf32>
    %1 = vector.shape_cast %0 : vector<1x1x1x4x64xf32> to vector<4x64xf32>
    %c0_4 = arith.constant 0 : index
    %c0_5 = arith.constant 0 : index
    %c1 = arith.constant 1 : index
    %c0_6 = arith.constant 0 : index
    %c0_7 = arith.constant 0 : index
    %2 = vector.load %arg1[%c0_4, %c0_5, %c1, %c0_6, %c0_7] : memref<1x2x2x4x64xf32, #tpu.memory_space<vmem>>, vector<1x1x1x4x64xf32>
    %3 = vector.shape_cast %2 : vector<1x1x1x4x64xf32> to vector<4x64xf32>
    %4 = arith.maximumf %1, %3 : vector<4x64xf32>
    %c0_8 = arith.constant 0 : index
    %c1_9 = arith.constant 1 : index
    %c0_10 = arith.constant 0 : index
    %c0_11 = arith.constant 0 : index
    %c0_12 = arith.constant 0 : index
    %5 = vector.load %arg1[%c0_8, %c1_9, %c0_10, %c0_11, %c0_12] : memref<1x2x2x4x64xf32, #tpu.memory_space<vmem>>, vector<1x1x1x4x64xf32>
    %6 = vector.shape_cast %5 : vector<1x1x1x4x64xf32> to vector<4x64xf32>
    %c0_13 = arith.constant 0 : index
    %c1_14 = arith.constant 1 : index
    %c1_15 = arith.constant 1 : index
    %c0_16 = arith.constant 0 : index
    %c0_17 = arith.constant 0 : index
    %7 = vector.load %arg1[%c0_13, %c1_14, %c1_15, %c0_16, %c0_17] : memref<1x2x2x4x64xf32, #tpu.memory_space<vmem>>, vector<1x1x1x4x64xf32>
    %8 = vector.shape_cast %7 : vector<1x1x1x4x64xf32> to vector<4x64xf32>
    %9 = arith.maximumf %6, %8 : vector<4x64xf32>
    %10 = arith.maximumf %4, %9 : vector<4x64xf32>
    %11 = tpu.iota {dimensions = array<i32: 1>} : vector<1x64xi32>
    %c8_i32 = arith.constant 8 : i32
    %c0_i32 = arith.constant 0 : i32
    %12 = arith.cmpi eq, %c8_i32, %c0_i32 : i32
    %c1_i32 = arith.constant 1 : i32
    %13 = arith.select %12, %c1_i32, %c8_i32 : i32
    %14 = vector.broadcast %13 : i32 to vector<1x64xi32>
    %15 = arith.remsi %11, %14 : vector<1x64xi32>
    %c0_i32_18 = arith.constant 0 : i32
    %16 = vector.broadcast %c0_i32_18 : i32 to vector<1x64xi32>
    %17 = arith.cmpi ne, %15, %16 : vector<1x64xi32>
    %c0_i32_19 = arith.constant 0 : i32
    %18 = vector.broadcast %c0_i32_19 : i32 to vector<1x64xi32>
    %19 = arith.cmpi slt, %15, %18 : vector<1x64xi32>
    %c0_i32_20 = arith.constant 0 : i32
    %20 = arith.cmpi slt, %13, %c0_i32_20 : i32
    %21 = vector.broadcast %20 : i1 to vector<1x64xi1>
    %22 = vector.broadcast %21 : vector<1x64xi1> to vector<1x64xi1>
    %23 = arith.xori %19, %22 : vector<1x64xi1>
    %24 = arith.andi %23, %17 : vector<1x64xi1>
    %25 = vector.broadcast %13 : i32 to vector<1x64xi32>
    %26 = arith.addi %15, %25 : vector<1x64xi32>
    %27 = arith.select %24, %26, %15 : vector<1x64xi1>, vector<1x64xi32>
    %c0_i32_21 = arith.constant 0 : i32
    %28 = vector.broadcast %c0_i32_21 : i32 to vector<1x64xi32>
    %29 = arith.cmpi ne, %27, %28 : vector<1x64xi32>
    %30 = arith.extui %29 : vector<1x64xi1> to vector<1x64xi32>
    %31 = arith.sitofp %30 : vector<1x64xi32> to vector<1x64xf32>
    %c7_i32 = arith.constant 7 : i32
    %32 = vector.broadcast %c7_i32 : i32 to vector<1x64xi32>
    %33 = arith.cmpi ne, %27, %32 : vector<1x64xi32>
    %34 = arith.extui %33 : vector<1x64xi1> to vector<1x64xi32>
    %35 = arith.sitofp %34 : vector<1x64xi32> to vector<1x64xf32>
    %cst = arith.constant 0.000000e+00 : f32
    %36 = vector.broadcast %cst : f32 to vector<4x9xf32>
    %c0_22 = arith.constant 0 : index
    %c0_23 = arith.constant 0 : index
    %37 = vector.load %arg15[%c0_22, %c0_23] : memref<4x82xf32, #tpu.memory_space<vmem>>, vector<4x9xf32>
    tpu.vector_store %arg15[%c0_22, %c0_23], %36 {strides = array<i32>} : memref<4x82xf32, #tpu.memory_space<vmem>>, vector<4x9xf32>,
    %c0_24 = arith.constant 0 : index
    %c73 = arith.constant 73 : index
    %38 = vector.load %arg15[%c0_24, %c73] : memref<4x82xf32, #tpu.memory_space<vmem>>, vector<4x9xf32>
    tpu.vector_store %arg15[%c0_24, %c73], %36 {strides = array<i32>} : memref<4x82xf32, #tpu.memory_space<vmem>>, vector<4x9xf32>,
    %cst_25 = arith.constant 0.000000e+00 : f32
    %39 = vector.broadcast %cst_25 : f32 to vector<8x9xf32>
    %c0_26 = arith.constant 0 : index
    %c0_27 = arith.constant 0 : index
    %40 = vector.load %arg16[%c0_26, %c0_27] : memref<8x82xf32, #tpu.memory_space<vmem>>, vector<8x9xf32>
    tpu.vector_store %arg16[%c0_26, %c0_27], %39 {strides = array<i32>} : memref<8x82xf32, #tpu.memory_space<vmem>>, vector<8x9xf32>,
    %c0_28 = arith.constant 0 : index
    %c73_29 = arith.constant 73 : index
    %41 = vector.load %arg16[%c0_28, %c73_29] : memref<8x82xf32, #tpu.memory_space<vmem>>, vector<8x9xf32>
    tpu.vector_store %arg16[%c0_28, %c73_29], %39 {strides = array<i32>} : memref<8x82xf32, #tpu.memory_space<vmem>>, vector<8x9xf32>,
    %c0_30 = arith.constant 0 : index
    %c0_31 = arith.constant 0 : index
    %42 = vector.load %arg2[%c0_30, %c0_31] : memref<4x1xf32, #tpu.memory_space<vmem>>, vector<4x1xf32>
    %43 = vector.broadcast %42 : vector<4x1xf32> to vector<4x64xf32>
    %44 = arith.mulf %10, %43 : vector<4x64xf32>
    %c0_32 = arith.constant 0 : index
    %c0_33 = arith.constant 0 : index
    %45 = vector.load %arg3[%c0_32, %c0_33] : memref<4x1xf32, #tpu.memory_space<vmem>>, vector<4x1xf32>
    %46 = vector.broadcast %45 : vector<4x1xf32> to vector<4x64xf32>
    %47 = arith.addf %44, %46 : vector<4x64xf32>
    %cst_34 = arith.constant 0.000000e+00 : f32
    %48 = vector.broadcast %cst_34 : f32 to vector<4x64xf32>
    %49 = arith.maximumf %47, %48 : vector<4x64xf32>
    %c0_35 = arith.constant 0 : index
    %c9 = arith.constant 9 : index
    %50 = vector.load %arg15[%c0_35, %c9] : memref<4x82xf32, #tpu.memory_space<vmem>>, vector<4x64xf32>
    tpu.vector_store %arg15[%c0_35, %c9], %49 {strides = array<i32>} : memref<4x82xf32, #tpu.memory_space<vmem>>, vector<4x64xf32>,
    %c0_36 = arith.constant 0 : index
    %c0_37 = arith.constant 0 : index
    %51 = vector.load %arg15[%c0_36, %c0_37] : memref<4x82xf32, #tpu.memory_space<vmem>>, vector<4x64xf32>
    %52 = vector.broadcast %31 : vector<1x64xf32> to vector<4x64xf32>
    %53 = arith.mulf %51, %52 : vector<4x64xf32>
    %c0_38 = arith.constant 0 : index
    %c1_39 = arith.constant 1 : index
    %54 = vector.load %arg15[%c0_38, %c1_39] : memref<4x82xf32, #tpu.memory_space<vmem>>, vector<4x64xf32>
    %c0_40 = arith.constant 0 : index
    %c2 = arith.constant 2 : index
    %55 = vector.load %arg15[%c0_40, %c2] : memref<4x82xf32, #tpu.memory_space<vmem>>, vector<4x64xf32>
    %56 = vector.broadcast %35 : vector<1x64xf32> to vector<4x64xf32>
    %57 = arith.mulf %55, %56 : vector<4x64xf32>
    %c0_41 = arith.constant 0 : index
    %c8 = arith.constant 8 : index
    %58 = vector.load %arg15[%c0_41, %c8] : memref<4x82xf32, #tpu.memory_space<vmem>>, vector<4x64xf32>
    %59 = vector.broadcast %31 : vector<1x64xf32> to vector<4x64xf32>
    %60 = arith.mulf %58, %59 : vector<4x64xf32>
    %c0_42 = arith.constant 0 : index
    %c9_43 = arith.constant 9 : index
    %61 = vector.load %arg15[%c0_42, %c9_43] : memref<4x82xf32, #tpu.memory_space<vmem>>, vector<4x64xf32>
    %c0_44 = arith.constant 0 : index
    %c10 = arith.constant 10 : index
    %62 = vector.load %arg15[%c0_44, %c10] : memref<4x82xf32, #tpu.memory_space<vmem>>, vector<4x64xf32>
    %63 = vector.broadcast %35 : vector<1x64xf32> to vector<4x64xf32>
    %64 = arith.mulf %62, %63 : vector<4x64xf32>
    %c0_45 = arith.constant 0 : index
    %c16 = arith.constant 16 : index
    %65 = vector.load %arg15[%c0_45, %c16] : memref<4x82xf32, #tpu.memory_space<vmem>>, vector<4x64xf32>
    %66 = vector.broadcast %31 : vector<1x64xf32> to vector<4x64xf32>
    %67 = arith.mulf %65, %66 : vector<4x64xf32>
    %c0_46 = arith.constant 0 : index
    %c17 = arith.constant 17 : index
    %68 = vector.load %arg15[%c0_46, %c17] : memref<4x82xf32, #tpu.memory_space<vmem>>, vector<4x64xf32>
    %c0_47 = arith.constant 0 : index
    %c18 = arith.constant 18 : index
    %69 = vector.load %arg15[%c0_47, %c18] : memref<4x82xf32, #tpu.memory_space<vmem>>, vector<4x64xf32>
    %70 = vector.broadcast %35 : vector<1x64xf32> to vector<4x64xf32>
    %71 = arith.mulf %69, %70 : vector<4x64xf32>
    %72 = tpu.concatenate %53, %54, %57, %60, %61, %64, %67, %68, %71 in 0 : vector<4x64xf32>, vector<4x64xf32>, vector<4x64xf32>, vector<4x64xf32>, vector<4x64xf32>, vector<4x64xf32>, vector<4x64xf32>, vector<4x64xf32>, vector<4x64xf32> -> vector<36x64xf32>
    %73 = arith.truncf %72 : vector<36x64xf32> to vector<36x64xbf16>
    %c0_48 = arith.constant 0 : index
    %c0_49 = arith.constant 0 : index
    %74 = vector.load %arg4[%c0_48, %c0_49] : memref<8x36xbf16, #tpu.memory_space<vmem>>, vector<8x36xbf16>
    %cst_50 = arith.constant dense<0.000000e+00> : vector<8x64xf32>
    %75 = tpu.matmul %74, %73, %cst_50 {dimension_numbers = #tpu.dot_dimension_numbers<[1], [0], [0], [1], [0, 0, 1, 1], [], []>} : vector<8x36xbf16>, vector<36x64xbf16>, vector<8x64xf32> -> vector<8x64xf32>
    %c0_51 = arith.constant 0 : index
    %c0_52 = arith.constant 0 : index
    %76 = vector.load %arg5[%c0_51, %c0_52] : memref<8x1xf32, #tpu.memory_space<vmem>>, vector<8x1xf32>
    %77 = vector.broadcast %76 : vector<8x1xf32> to vector<8x64xf32>
    %78 = arith.addf %75, %77 : vector<8x64xf32>
    %c0_53 = arith.constant 0 : index
    %c0_54 = arith.constant 0 : index
    %79 = vector.load %arg10[%c0_53, %c0_54] : memref<4x1xf32, #tpu.memory_space<vmem>>, vector<4x1xf32>
    %80 = vector.broadcast %79 : vector<4x1xf32> to vector<4x64xf32>
    %81 = arith.mulf %10, %80 : vector<4x64xf32>
    %c0_55 = arith.constant 0 : index
    %c0_56 = arith.constant 0 : index
    %82 = vector.load %arg11[%c0_55, %c0_56] : memref<4x1xf32, #tpu.memory_space<vmem>>, vector<4x1xf32>
    %83 = vector.broadcast %82 : vector<4x1xf32> to vector<4x64xf32>
    %84 = arith.addf %81, %83 : vector<4x64xf32>
    %cst_57 = arith.constant 0.000000e+00 : f32
    %85 = vector.broadcast %cst_57 : f32 to vector<4x64xf32>
    %86 = arith.maximumf %84, %85 : vector<4x64xf32>
    %c0_58 = arith.constant 0 : index
    %c9_59 = arith.constant 9 : index
    %87 = vector.load %arg15[%c0_58, %c9_59] : memref<4x82xf32, #tpu.memory_space<vmem>>, vector<4x64xf32>
    tpu.vector_store %arg15[%c0_58, %c9_59], %86 {strides = array<i32>} : memref<4x82xf32, #tpu.memory_space<vmem>>, vector<4x64xf32>,
    %c0_60 = arith.constant 0 : index
    %c0_61 = arith.constant 0 : index
    %88 = vector.load %arg15[%c0_60, %c0_61] : memref<4x82xf32, #tpu.memory_space<vmem>>, vector<4x64xf32>
    %89 = vector.broadcast %31 : vector<1x64xf32> to vector<4x64xf32>
    %90 = arith.mulf %88, %89 : vector<4x64xf32>
    %c0_62 = arith.constant 0 : index
    %c1_63 = arith.constant 1 : index
    %91 = vector.load %arg15[%c0_62, %c1_63] : memref<4x82xf32, #tpu.memory_space<vmem>>, vector<4x64xf32>
    %c0_64 = arith.constant 0 : index
    %c2_65 = arith.constant 2 : index
    %92 = vector.load %arg15[%c0_64, %c2_65] : memref<4x82xf32, #tpu.memory_space<vmem>>, vector<4x64xf32>
    %93 = vector.broadcast %35 : vector<1x64xf32> to vector<4x64xf32>
    %94 = arith.mulf %92, %93 : vector<4x64xf32>
    %c0_66 = arith.constant 0 : index
    %c8_67 = arith.constant 8 : index
    %95 = vector.load %arg15[%c0_66, %c8_67] : memref<4x82xf32, #tpu.memory_space<vmem>>, vector<4x64xf32>
    %96 = vector.broadcast %31 : vector<1x64xf32> to vector<4x64xf32>
    %97 = arith.mulf %95, %96 : vector<4x64xf32>
    %c0_68 = arith.constant 0 : index
    %c9_69 = arith.constant 9 : index
    %98 = vector.load %arg15[%c0_68, %c9_69] : memref<4x82xf32, #tpu.memory_space<vmem>>, vector<4x64xf32>
    %c0_70 = arith.constant 0 : index
    %c10_71 = arith.constant 10 : index
    %99 = vector.load %arg15[%c0_70, %c10_71] : memref<4x82xf32, #tpu.memory_space<vmem>>, vector<4x64xf32>
    %100 = vector.broadcast %35 : vector<1x64xf32> to vector<4x64xf32>
    %101 = arith.mulf %99, %100 : vector<4x64xf32>
    %c0_72 = arith.constant 0 : index
    %c16_73 = arith.constant 16 : index
    %102 = vector.load %arg15[%c0_72, %c16_73] : memref<4x82xf32, #tpu.memory_space<vmem>>, vector<4x64xf32>
    %103 = vector.broadcast %31 : vector<1x64xf32> to vector<4x64xf32>
    %104 = arith.mulf %102, %103 : vector<4x64xf32>
    %c0_74 = arith.constant 0 : index
    %c17_75 = arith.constant 17 : index
    %105 = vector.load %arg15[%c0_74, %c17_75] : memref<4x82xf32, #tpu.memory_space<vmem>>, vector<4x64xf32>
    %c0_76 = arith.constant 0 : index
    %c18_77 = arith.constant 18 : index
    %106 = vector.load %arg15[%c0_76, %c18_77] : memref<4x82xf32, #tpu.memory_space<vmem>>, vector<4x64xf32>
    %107 = vector.broadcast %35 : vector<1x64xf32> to vector<4x64xf32>
    %108 = arith.mulf %106, %107 : vector<4x64xf32>
    %109 = tpu.concatenate %90, %91, %94, %97, %98, %101, %104, %105, %108 in 0 : vector<4x64xf32>, vector<4x64xf32>, vector<4x64xf32>, vector<4x64xf32>, vector<4x64xf32>, vector<4x64xf32>, vector<4x64xf32>, vector<4x64xf32>, vector<4x64xf32> -> vector<36x64xf32>
    %110 = arith.truncf %109 : vector<36x64xf32> to vector<36x64xbf16>
    %c0_78 = arith.constant 0 : index
    %c0_79 = arith.constant 0 : index
    %111 = vector.load %arg12[%c0_78, %c0_79] : memref<8x36xbf16, #tpu.memory_space<vmem>>, vector<8x36xbf16>
    %cst_80 = arith.constant dense<0.000000e+00> : vector<8x64xf32>
    %112 = tpu.matmul %111, %110, %cst_80 {dimension_numbers = #tpu.dot_dimension_numbers<[1], [0], [0], [1], [0, 0, 1, 1], [], []>} : vector<8x36xbf16>, vector<36x64xbf16>, vector<8x64xf32> -> vector<8x64xf32>
    %c0_81 = arith.constant 0 : index
    %c0_82 = arith.constant 0 : index
    %113 = vector.load %arg13[%c0_81, %c0_82] : memref<8x1xf32, #tpu.memory_space<vmem>>, vector<8x1xf32>
    %114 = vector.broadcast %113 : vector<8x1xf32> to vector<8x64xf32>
    %115 = arith.addf %112, %114 : vector<8x64xf32>
    %c0_83 = arith.constant 0 : index
    %c0_84 = arith.constant 0 : index
    %116 = vector.load %arg6[%c0_83, %c0_84] : memref<8x1xf32, #tpu.memory_space<vmem>>, vector<8x1xf32>
    %117 = vector.broadcast %116 : vector<8x1xf32> to vector<8x64xf32>
    %118 = arith.mulf %78, %117 : vector<8x64xf32>
    %c0_85 = arith.constant 0 : index
    %c0_86 = arith.constant 0 : index
    %119 = vector.load %arg7[%c0_85, %c0_86] : memref<8x1xf32, #tpu.memory_space<vmem>>, vector<8x1xf32>
    %120 = vector.broadcast %119 : vector<8x1xf32> to vector<8x64xf32>
    %121 = arith.addf %118, %120 : vector<8x64xf32>
    %cst_87 = arith.constant 0.000000e+00 : f32
    %122 = vector.broadcast %cst_87 : f32 to vector<8x64xf32>
    %123 = arith.maximumf %121, %122 : vector<8x64xf32>
    %c0_88 = arith.constant 0 : index
    %c9_89 = arith.constant 9 : index
    %124 = vector.load %arg16[%c0_88, %c9_89] : memref<8x82xf32, #tpu.memory_space<vmem>>, vector<8x64xf32>
    tpu.vector_store %arg16[%c0_88, %c9_89], %123 {strides = array<i32>} : memref<8x82xf32, #tpu.memory_space<vmem>>, vector<8x64xf32>,
    %c0_90 = arith.constant 0 : index
    %c0_91 = arith.constant 0 : index
    %125 = vector.load %arg16[%c0_90, %c0_91] : memref<8x82xf32, #tpu.memory_space<vmem>>, vector<8x64xf32>
    %126 = vector.broadcast %31 : vector<1x64xf32> to vector<8x64xf32>
    %127 = arith.mulf %125, %126 : vector<8x64xf32>
    %c0_92 = arith.constant 0 : index
    %c1_93 = arith.constant 1 : index
    %128 = vector.load %arg16[%c0_92, %c1_93] : memref<8x82xf32, #tpu.memory_space<vmem>>, vector<8x64xf32>
    %c0_94 = arith.constant 0 : index
    %c2_95 = arith.constant 2 : index
    %129 = vector.load %arg16[%c0_94, %c2_95] : memref<8x82xf32, #tpu.memory_space<vmem>>, vector<8x64xf32>
    %130 = vector.broadcast %35 : vector<1x64xf32> to vector<8x64xf32>
    %131 = arith.mulf %129, %130 : vector<8x64xf32>
    %c0_96 = arith.constant 0 : index
    %c8_97 = arith.constant 8 : index
    %132 = vector.load %arg16[%c0_96, %c8_97] : memref<8x82xf32, #tpu.memory_space<vmem>>, vector<8x64xf32>
    %133 = vector.broadcast %31 : vector<1x64xf32> to vector<8x64xf32>
    %134 = arith.mulf %132, %133 : vector<8x64xf32>
    %c0_98 = arith.constant 0 : index
    %c9_99 = arith.constant 9 : index
    %135 = vector.load %arg16[%c0_98, %c9_99] : memref<8x82xf32, #tpu.memory_space<vmem>>, vector<8x64xf32>
    %c0_100 = arith.constant 0 : index
    %c10_101 = arith.constant 10 : index
    %136 = vector.load %arg16[%c0_100, %c10_101] : memref<8x82xf32, #tpu.memory_space<vmem>>, vector<8x64xf32>
    %137 = vector.broadcast %35 : vector<1x64xf32> to vector<8x64xf32>
    %138 = arith.mulf %136, %137 : vector<8x64xf32>
    %c0_102 = arith.constant 0 : index
    %c16_103 = arith.constant 16 : index
    %139 = vector.load %arg16[%c0_102, %c16_103] : memref<8x82xf32, #tpu.memory_space<vmem>>, vector<8x64xf32>
    %140 = vector.broadcast %31 : vector<1x64xf32> to vector<8x64xf32>
    %141 = arith.mulf %139, %140 : vector<8x64xf32>
    %c0_104 = arith.constant 0 : index
    %c17_105 = arith.constant 17 : index
    %142 = vector.load %arg16[%c0_104, %c17_105] : memref<8x82xf32, #tpu.memory_space<vmem>>, vector<8x64xf32>
    %c0_106 = arith.constant 0 : index
    %c18_107 = arith.constant 18 : index
    %143 = vector.load %arg16[%c0_106, %c18_107] : memref<8x82xf32, #tpu.memory_space<vmem>>, vector<8x64xf32>
    %144 = vector.broadcast %35 : vector<1x64xf32> to vector<8x64xf32>
    %145 = arith.mulf %143, %144 : vector<8x64xf32>
    %146 = tpu.concatenate %127, %128, %131, %134, %135, %138, %141, %142, %145 in 0 : vector<8x64xf32>, vector<8x64xf32>, vector<8x64xf32>, vector<8x64xf32>, vector<8x64xf32>, vector<8x64xf32>, vector<8x64xf32>, vector<8x64xf32>, vector<8x64xf32> -> vector<72x64xf32>
    %147 = arith.truncf %146 : vector<72x64xf32> to vector<72x64xbf16>
    %c0_108 = arith.constant 0 : index
    %c0_109 = arith.constant 0 : index
    %148 = vector.load %arg8[%c0_108, %c0_109] : memref<8x72xbf16, #tpu.memory_space<vmem>>, vector<8x72xbf16>
    %cst_110 = arith.constant dense<0.000000e+00> : vector<8x64xf32>
    %149 = tpu.matmul %148, %147, %cst_110 {dimension_numbers = #tpu.dot_dimension_numbers<[1], [0], [0], [1], [0, 0, 1, 1], [], []>} : vector<8x72xbf16>, vector<72x64xbf16>, vector<8x64xf32> -> vector<8x64xf32>
    %c0_111 = arith.constant 0 : index
    %c0_112 = arith.constant 0 : index
    %150 = vector.load %arg9[%c0_111, %c0_112] : memref<8x1xf32, #tpu.memory_space<vmem>>, vector<8x1xf32>
    %151 = vector.broadcast %150 : vector<8x1xf32> to vector<8x64xf32>
    %152 = arith.addf %149, %151 : vector<8x64xf32>
    %153 = arith.addf %152, %115 : vector<8x64xf32>
    %c0_113 = arith.constant 0 : index
    %c0_114 = arith.constant 0 : index
    %c0_115 = arith.constant 0 : index
    %154 = vector.load %arg14[%c0_113, %c0_114, %c0_115] : memref<1x8x64xf32, #tpu.memory_space<vmem>>, vector<1x8x64xf32>
    %155 = vector.shape_cast %154 : vector<1x8x64xf32> to vector<8x64xf32>
    %156 = vector.shape_cast %153 : vector<8x64xf32> to vector<1x8x64xf32>
    tpu.vector_store %arg14[%c0_113, %c0_114, %c0_115], %156 {strides = array<i32>} : memref<1x8x64xf32, #tpu.memory_space<vmem>>, vector<1x8x64xf32>,
    return
  }
  func.func @transform_0(%arg0: i32) -> (i32, i32, i32, i32, i32) {
    %c0_i32 = arith.constant 0 : i32
    %c0_i32_0 = arith.constant 0 : i32
    %c0_i32_1 = arith.constant 0 : i32
    %c0_i32_2 = arith.constant 0 : i32
    %c0_i32_3 = arith.constant 0 : i32
    return %arg0, %c0_i32, %c0_i32_0, %c0_i32_1, %c0_i32_2 : i32, i32, i32, i32, i32
  }
  func.func @transform_1(%arg0: i32) -> (i32, i32) {
    %c0_i32 = arith.constant 0 : i32
    %c0_i32_0 = arith.constant 0 : i32
    %c0_i32_1 = arith.constant 0 : i32
    return %c0_i32, %c0_i32_0 : i32, i32
  }
  func.func @transform_2(%arg0: i32) -> (i32, i32) {
    %c0_i32 = arith.constant 0 : i32
    %c0_i32_0 = arith.constant 0 : i32
    %c0_i32_1 = arith.constant 0 : i32
    return %c0_i32, %c0_i32_0 : i32, i32
  }
  func.func @transform_3(%arg0: i32) -> (i32, i32) {
    %c0_i32 = arith.constant 0 : i32
    %c0_i32_0 = arith.constant 0 : i32
    %c0_i32_1 = arith.constant 0 : i32
    return %c0_i32, %c0_i32_0 : i32, i32
  }
  func.func @transform_4(%arg0: i32) -> (i32, i32) {
    %c0_i32 = arith.constant 0 : i32
    %c0_i32_0 = arith.constant 0 : i32
    %c0_i32_1 = arith.constant 0 : i32
    return %c0_i32, %c0_i32_0 : i32, i32
  }
  func.func @transform_5(%arg0: i32) -> (i32, i32) {
    %c0_i32 = arith.constant 0 : i32
    %c0_i32_0 = arith.constant 0 : i32
    %c0_i32_1 = arith.constant 0 : i32
    return %c0_i32, %c0_i32_0 : i32, i32
  }
  func.func @transform_6(%arg0: i32) -> (i32, i32) {
    %c0_i32 = arith.constant 0 : i32
    %c0_i32_0 = arith.constant 0 : i32
    %c0_i32_1 = arith.constant 0 : i32
    return %c0_i32, %c0_i32_0 : i32, i32
  }
  func.func @transform_7(%arg0: i32) -> (i32, i32) {
    %c0_i32 = arith.constant 0 : i32
    %c0_i32_0 = arith.constant 0 : i32
    %c0_i32_1 = arith.constant 0 : i32
    return %c0_i32, %c0_i32_0 : i32, i32
  }
  func.func @transform_8(%arg0: i32) -> (i32, i32) {
    %c0_i32 = arith.constant 0 : i32
    %c0_i32_0 = arith.constant 0 : i32
    %c0_i32_1 = arith.constant 0 : i32
    return %c0_i32, %c0_i32_0 : i32, i32
  }
  func.func @transform_9(%arg0: i32) -> (i32, i32) {
    %c0_i32 = arith.constant 0 : i32
    %c0_i32_0 = arith.constant 0 : i32
    %c0_i32_1 = arith.constant 0 : i32
    return %c0_i32, %c0_i32_0 : i32, i32
  }
  func.func @transform_10(%arg0: i32) -> (i32, i32) {
    %c0_i32 = arith.constant 0 : i32
    %c0_i32_0 = arith.constant 0 : i32
    %c0_i32_1 = arith.constant 0 : i32
    return %c0_i32, %c0_i32_0 : i32, i32
  }
  func.func @transform_11(%arg0: i32) -> (i32, i32) {
    %c0_i32 = arith.constant 0 : i32
    %c0_i32_0 = arith.constant 0 : i32
    %c0_i32_1 = arith.constant 0 : i32
    return %c0_i32, %c0_i32_0 : i32, i32
  }
  func.func @transform_12(%arg0: i32) -> (i32, i32) {
    %c0_i32 = arith.constant 0 : i32
    %c0_i32_0 = arith.constant 0 : i32
    %c0_i32_1 = arith.constant 0 : i32
    return %c0_i32, %c0_i32_0 : i32, i32
  }
  func.func @transform_13(%arg0: i32) -> (i32, i32, i32) {
    %c0_i32 = arith.constant 0 : i32
    %c0_i32_0 = arith.constant 0 : i32
    %c0_i32_1 = arith.constant 0 : i32
    return %arg0, %c0_i32, %c0_i32_0 : i32, i32, i32
  }
}

</mosaic_0001>

<llo_original>
// kernel: en_conv_forward.1
$region0: #{en_conv_forward.1}
  #allocation0 [shape = 'u32[]', space=smem, size = 0x4, offset = 0x4, fixed_abs, tag = 'smem constant byte address 0x4 - core index']
  #allocation1 [shape = 'u32[72,128]{1,0:T(1,128)}', space=vmem, size = 0x9000, scoped, tag = 'internal scratch']
  #allocation2 [shape = 'f32[4,82]{1,0:T(4,128)}', space=vmem, size = 0x800, scoped, tag = 'scratch operand']
  #allocation3 [shape = 'f32[8,82]{1,0:T(8,128)}', space=vmem, size = 0x1000, scoped, tag = 'scratch operand']
  %s0 = inlined_call_operand.vmem [shape: f32[2,2,2,4,64], index: 0, kind: input, shape index: {}]
  %s1 = inlined_call_operand.vmem [shape: f32[4,1], index: 1, kind: input, shape index: {}]
  %s2 = inlined_call_operand.vmem [shape: f32[4,1], index: 2, kind: input, shape index: {}]
  %s3 = inlined_call_operand.vmem [shape: bf16[8,36], index: 3, kind: input, shape index: {}]
  %s4 = inlined_call_operand.vmem [shape: f32[8,1], index: 4, kind: input, shape index: {}]
  %s5 = inlined_call_operand.vmem [shape: f32[8,1], index: 5, kind: input, shape index: {}]
  %s6 = inlined_call_operand.vmem [shape: f32[8,1], index: 6, kind: input, shape index: {}]
  %s7 = inlined_call_operand.vmem [shape: bf16[8,72], index: 7, kind: input, shape index: {}]
  %s8 = inlined_call_operand.vmem [shape: f32[8,1], index: 8, kind: input, shape index: {}]
  %s9 = inlined_call_operand.vmem [shape: f32[4,1], index: 9, kind: input, shape index: {}]
  %s10 = inlined_call_operand.vmem [shape: f32[4,1], index: 10, kind: input, shape index: {}]
  %s11 = inlined_call_operand.vmem [shape: bf16[8,36], index: 11, kind: input, shape index: {}]
  %s12 = inlined_call_operand.vmem [shape: f32[8,1], index: 12, kind: input, shape index: {}]
  %s13 = inlined_call_operand.vmem [shape: f32[2,8,64], index: 13, kind: output, shape index: {}]
  %s14 = sld [smem:[#allocation0]]
  $region85: #{en_conv_forward.1} parent=0
    _
  %s16 = ssub.s32 1, %s14
  %s17 = scalar_select 0, %s16, %s14
  loop: start=0, step=1, limit=4
  $region2: #{en_conv_forward.1} parent=0 // loop_pre_header
    _
  $region3: #{en_conv_forward.1} parent=0 // loop_header
    %s19 = sphi 0, %s23
    %p20 = scmp.ge.s32.totalorder %s19, 4
    %s29 = sphi 0, %s31
    %s32 = sphi 0, %s29
    %s33 = sphi 0, %s32
    %s49 = sphi 0, %s33
    %s53 = sphi 0, %s53
    %s55 = sphi 0, %s53
    %s56 = sphi 0, %s55
    %s70 = sphi 0, %s56
    %s74 = sphi 0, %s74
    %s76 = sphi 0, %s74
    %s77 = sphi 0, %s76
    %s91 = sphi 0, %s77
    %s95 = sphi 0, %s95
    %s97 = sphi 0, %s95
    %s98 = sphi 0, %s97
    %s112 = sphi 0, %s98
    %s116 = sphi 0, %s116
    %s118 = sphi 0, %s116
    %s119 = sphi 0, %s118
    %s133 = sphi 0, %s119
    %s137 = sphi 0, %s137
    %s139 = sphi 0, %s137
    %s140 = sphi 0, %s139
    %s154 = sphi 0, %s140
    %s158 = sphi 0, %s158
    %s160 = sphi 0, %s158
    %s161 = sphi 0, %s160
    %s175 = sphi 0, %s161
    %s179 = sphi 0, %s179
    %s181 = sphi 0, %s179
    %s182 = sphi 0, %s181
    %s196 = sphi 0, %s182
    %s200 = sphi 0, %s200
    %s202 = sphi 0, %s200
    %s203 = sphi 0, %s202
    %s217 = sphi 0, %s203
    %s221 = sphi 0, %s221
    %s223 = sphi 0, %s221
    %s224 = sphi 0, %s223
    %s238 = sphi 0, %s224
    %s242 = sphi 0, %s242
    %s244 = sphi 0, %s242
    %s245 = sphi 0, %s244
    %s259 = sphi 0, %s245
    %s263 = sphi 0, %s263
    %s265 = sphi 0, %s263
    %s266 = sphi 0, %s265
    %s280 = sphi 0, %s266
    %s284 = sphi 0, %s284
    %s286 = sphi 0, %s284
    %s287 = sphi 0, %s286
    %s301 = sphi 0, %s287
    %s307 = sphi 0, %s309
    %s310 = sphi 0, %s307
    %s311 = sphi 0, %s310
    %s327 = sphi 0, %s311
  $region4: #{en_conv_forward.1} parent=0 // loop_header_branch
    %22 = sbr.rel (%p20) target = $region8
  $region5: #{en_conv_forward.1} parent=0 // loop_body
    %s24 = ssub.s32 %s19, 1
    %s25 = ssub.s32 %s19, 2
    %s26 = sadd.s32 %s19, 1
    %s27 = ssub.s32 %s19, %s26
    %p28 = scmp.eq.s32.totalorder %s27, 0
    %s30 = sadd.s32 %s29, 1
    %s31 = scalar_select %p28, %s29, %s30
    %p34 = pneg %p28
    %p35 = scmp.eq.s32.totalorder %s19, 1
    %p36 = por %p34, %p35
    %p37 = scmp.ne.s32.totalorder %s29, %s32
    %p38 = scmp.eq.s32.totalorder %s19, 0
    %p39 = por %p37, %p38
    %p40 = scmp.ne.s32.totalorder %s29, %s32
    %p41 = scmp.eq.s32.totalorder %s24, 1
    %p42 = por %p40, %p41
    %p43 = scmp.ne.s32.totalorder %s32, %s33
    %p44 = scmp.eq.s32.totalorder %s24, 0
    %p45 = por %p43, %p44
    %p46 = scmp.ne.s32.totalorder %s32, %s33
    %p47 = scmp.eq.s32.totalorder %s25, 1
    %p48 = por %p46, %p47
    %p50 = scmp.ne.s32.totalorder %s33, %s49
    %p51 = scmp.eq.s32.totalorder %s25, 0
    %p52 = por %p50, %p51
    %s54 = sadd.s32 %s53, 1
    %p57 = scmp.eq.s32.totalorder %s19, 1
    %p58 = scmp.ne.s32.totalorder %s53, %s55
    %p59 = scmp.eq.s32.totalorder %s19, 0
    %p60 = por %p58, %p59
    %p61 = scmp.ne.s32.totalorder %s53, %s55
    %p62 = scmp.eq.s32.totalorder %s24, 1
    %p63 = por %p61, %p62
    %p64 = scmp.ne.s32.totalorder %s55, %s56
    %p65 = scmp.eq.s32.totalorder %s24, 0
    %p66 = por %p64, %p65
    %p67 = scmp.ne.s32.totalorder %s55, %s56
    %p68 = scmp.eq.s32.totalorder %s25, 1
    %p69 = por %p67, %p68
    %p71 = scmp.ne.s32.totalorder %s56, %s70
    %p72 = scmp.eq.s32.totalorder %s25, 0
    %p73 = por %p71, %p72
    %s75 = sadd.s32 %s74, 1
    %p78 = scmp.eq.s32.totalorder %s19, 1
    %p79 = scmp.ne.s32.totalorder %s74, %s76
    %p80 = scmp.eq.s32.totalorder %s19, 0
    %p81 = por %p79, %p80
    %p82 = scmp.ne.s32.totalorder %s74, %s76
    %p83 = scmp.eq.s32.totalorder %s24, 1
    %p84 = por %p82, %p83
    %p85 = scmp.ne.s32.totalorder %s76, %s77
    %p86 = scmp.eq.s32.totalorder %s24, 0
    %p87 = por %p85, %p86
    %p88 = scmp.ne.s32.totalorder %s76, %s77
    %p89 = scmp.eq.s32.totalorder %s25, 1
    %p90 = por %p88, %p89
    %p92 = scmp.ne.s32.totalorder %s77, %s91
    %p93 = scmp.eq.s32.totalorder %s25, 0
    %p94 = por %p92, %p93
    %s96 = sadd.s32 %s95, 1
    %p99 = scmp.eq.s32.totalorder %s19, 1
    %p100 = scmp.ne.s32.totalorder %s95, %s97
    %p101 = scmp.eq.s32.totalorder %s19, 0
    %p102 = por %p100, %p101
    %p103 = scmp.ne.s32.totalorder %s95, %s97
    %p104 = scmp.eq.s32.totalorder %s24, 1
    %p105 = por %p103, %p104
    %p106 = scmp.ne.s32.totalorder %s97, %s98
    %p107 = scmp.eq.s32.totalorder %s24, 0
    %p108 = por %p106, %p107
    %p109 = scmp.ne.s32.totalorder %s97, %s98
    %p110 = scmp.eq.s32.totalorder %s25, 1
    %p111 = por %p109, %p110
    %p113 = scmp.ne.s32.totalorder %s98, %s112
    %p114 = scmp.eq.s32.totalorder %s25, 0
    %p115 = por %p113, %p114
    %s117 = sadd.s32 %s116, 1
    %p120 = scmp.eq.s32.totalorder %s19, 1
    %p121 = scmp.ne.s32.totalorder %s116, %s118
    %p122 = scmp.eq.s32.totalorder %s19, 0
    %p123 = por %p121, %p122
    %p124 = scmp.ne.s32.totalorder %s116, %s118
    %p125 = scmp.eq.s32.totalorder %s24, 1
    %p126 = por %p124, %p125
    %p127 = scmp.ne.s32.totalorder %s118, %s119
    %p128 = scmp.eq.s32.totalorder %s24, 0
    %p129 = por %p127, %p128
    %p130 = scmp.ne.s32.totalorder %s118, %s119
    %p131 = scmp.eq.s32.totalorder %s25, 1
    %p132 = por %p130, %p131
    %p134 = scmp.ne.s32.totalorder %s119, %s133
    %p135 = scmp.eq.s32.totalorder %s25, 0
    %p136 = por %p134, %p135
    %s138 = sadd.s32 %s137, 1
    %p141 = scmp.eq.s32.totalorder %s19, 1
    %p142 = scmp.ne.s32.totalorder %s137, %s139
    %p143 = scmp.eq.s32.totalorder %s19, 0
    %p144 = por %p142, %p143
    %p145 = scmp.ne.s32.totalorder %s137, %s139
    %p146 = scmp.eq.s32.totalorder %s24, 1
    %p147 = por %p145, %p146
    %p148 = scmp.ne.s32.totalorder %s139, %s140
    %p149 = scmp.eq.s32.totalorder %s24, 0
    %p150 = por %p148, %p149
    %p151 = scmp.ne.s32.totalorder %s139, %s140
    %p152 = scmp.eq.s32.totalorder %s25, 1
    %p153 = por %p151, %p152
    %p155 = scmp.ne.s32.totalorder %s140, %s154
    %p156 = scmp.eq.s32.totalorder %s25, 0
    %p157 = por %p155, %p156
    %s159 = sadd.s32 %s158, 1
    %p162 = scmp.eq.s32.totalorder %s19, 1
    %p163 = scmp.ne.s32.totalorder %s158, %s160
    %p164 = scmp.eq.s32.totalorder %s19, 0
    %p165 = por %p163, %p164
    %p166 = scmp.ne.s32.totalorder %s158, %s160
    %p167 = scmp.eq.s32.totalorder %s24, 1
    %p168 = por %p166, %p167
    %p169 = scmp.ne.s32.totalorder %s160, %s161
    %p170 = scmp.eq.s32.totalorder %s24, 0
    %p171 = por %p169, %p170
    %p172 = scmp.ne.s32.totalorder %s160, %s161
    %p173 = scmp.eq.s32.totalorder %s25, 1
    %p174 = por %p172, %p173
    %p176 = scmp.ne.s32.totalorder %s161, %s175
    %p177 = scmp.eq.s32.totalorder %s25, 0
    %p178 = por %p176, %p177
    %s180 = sadd.s32 %s179, 1
    %p183 = scmp.eq.s32.totalorder %s19, 1
    %p184 = scmp.ne.s32.totalorder %s179, %s181
    %p185 = scmp.eq.s32.totalorder %s19, 0
    %p186 = por %p184, %p185
    %p187 = scmp.ne.s32.totalorder %s179, %s181
    %p188 = scmp.eq.s32.totalorder %s24, 1
    %p189 = por %p187, %p188
    %p190 = scmp.ne.s32.totalorder %s181, %s182
    %p191 = scmp.eq.s32.totalorder %s24, 0
    %p192 = por %p190, %p191
    %p193 = scmp.ne.s32.totalorder %s181, %s182
    %p194 = scmp.eq.s32.totalorder %s25, 1
    %p195 = por %p193, %p194
    %p197 = scmp.ne.s32.totalorder %s182, %s196
    %p198 = scmp.eq.s32.totalorder %s25, 0
    %p199 = por %p197, %p198
    %s201 = sadd.s32 %s200, 1
    %p204 = scmp.eq.s32.totalorder %s19, 1
    %p205 = scmp.ne.s32.totalorder %s200, %s202
    %p206 = scmp.eq.s32.totalorder %s19, 0
    %p207 = por %p205, %p206
    %p208 = scmp.ne.s32.totalorder %s200, %s202
    %p209 = scmp.eq.s32.totalorder %s24, 1
    %p210 = por %p208, %p209
    %p211 = scmp.ne.s32.totalorder %s202, %s203
    %p212 = scmp.eq.s32.totalorder %s24, 0
    %p213 = por %p211, %p212
    %p214 = scmp.ne.s32.totalorder %s202, %s203
    %p215 = scmp.eq.s32.totalorder %s25, 1
    %p216 = por %p214, %p215
    %p218 = scmp.ne.s32.totalorder %s203, %s217
    %p219 = scmp.eq.s32.totalorder %s25, 0
    %p220 = por %p218, %p219
    %s222 = sadd.s32 %s221, 1
    %p225 = scmp.eq.s32.totalorder %s19, 1
    %p226 = scmp.ne.s32.totalorder %s221, %s223
    %p227 = scmp.eq.s32.totalorder %s19, 0
    %p228 = por %p226, %p227
    %p229 = scmp.ne.s32.totalorder %s221, %s223
    %p230 = scmp.eq.s32.totalorder %s24, 1
    %p231 = por %p229, %p230
    %p232 = scmp.ne.s32.totalorder %s223, %s224
    %p233 = scmp.eq.s32.totalorder %s24, 0
    %p234 = por %p232, %p233
    %p235 = scmp.ne.s32.totalorder %s223, %s224
    %p236 = scmp.eq.s32.totalorder %s25, 1
    %p237 = por %p235, %p236
    %p239 = scmp.ne.s32.totalorder %s224, %s238
    %p240 = scmp.eq.s32.totalorder %s25, 0
    %p241 = por %p239, %p240
    %s243 = sadd.s32 %s242, 1
    %p246 = scmp.eq.s32.totalorder %s19, 1
    %p247 = scmp.ne.s32.totalorder %s242, %s244
    %p248 = scmp.eq.s32.totalorder %s19, 0
    %p249 = por %p247, %p248
    %p250 = scmp.ne.s32.totalorder %s242, %s244
    %p251 = scmp.eq.s32.totalorder %s24, 1
    %p252 = por %p250, %p251
    %p253 = scmp.ne.s32.totalorder %s244, %s245
    %p254 = scmp.eq.s32.totalorder %s24, 0
    %p255 = por %p253, %p254
    %p256 = scmp.ne.s32.totalorder %s244, %s245
    %p257 = scmp.eq.s32.totalorder %s25, 1
    %p258 = por %p256, %p257
    %p260 = scmp.ne.s32.totalorder %s245, %s259
    %p261 = scmp.eq.s32.totalorder %s25, 0
    %p262 = por %p260, %p261
    %s264 = sadd.s32 %s263, 1
    %p267 = scmp.eq.s32.totalorder %s19, 1
    %p268 = scmp.ne.s32.totalorder %s263, %s265
    %p269 = scmp.eq.s32.totalorder %s19, 0
    %p270 = por %p268, %p269
    %p271 = scmp.ne.s32.totalorder %s263, %s265
    %p272 = scmp.eq.s32.totalorder %s24, 1
    %p273 = por %p271, %p272
    %p274 = scmp.ne.s32.totalorder %s265, %s266
    %p275 = scmp.eq.s32.totalorder %s24, 0
    %p276 = por %p274, %p275
    %p277 = scmp.ne.s32.totalorder %s265, %s266
    %p278 = scmp.eq.s32.totalorder %s25, 1
    %p279 = por %p277, %p278
    %p281 = scmp.ne.s32.totalorder %s266, %s280
    %p282 = scmp.eq.s32.totalorder %s25, 0
    %p283 = por %p281, %p282
    %s285 = sadd.s32 %s284, 1
    %p288 = scmp.eq.s32.totalorder %s19, 1
    %p289 = scmp.ne.s32.totalorder %s284, %s286
    %p290 = scmp.eq.s32.totalorder %s19, 0
    %p291 = por %p289, %p290
    %p292 = scmp.ne.s32.totalorder %s284, %s286
    %p293 = scmp.eq.s32.totalorder %s24, 1
    %p294 = por %p292, %p293
    %p295 = scmp.ne.s32.totalorder %s286, %s287
    %p296 = scmp.eq.s32.totalorder %s24, 0
    %p297 = por %p295, %p296
    %p298 = scmp.ne.s32.totalorder %s286, %s287
    %p299 = scmp.eq.s32.totalorder %s25, 1
    %p300 = por %p298, %p299
    %p302 = scmp.ne.s32.totalorder %s287, %s301
    %p303 = scmp.eq.s32.totalorder %s25, 0
    %p304 = por %p302, %p303
    %s305 = ssub.s32 %s19, %s26
    %p306 = scmp.eq.s32.totalorder %s305, 0
    %s308 = sadd.s32 %s307, 1
    %s309 = scalar_select %p306, %s307, %s308
    %p312 = pneg %p306
    %p313 = scmp.eq.s32.totalorder %s19, 1
    %p314 = por %p312, %p313
    %p315 = scmp.ne.s32.totalorder %s307, %s310
    %p316 = scmp.eq.s32.totalorder %s19, 0
    %p317 = por %p315, %p316
    %p318 = scmp.ne.s32.totalorder %s307, %s310
    %p319 = scmp.eq.s32.totalorder %s24, 1
    %p320 = por %p318, %p319
    %p321 = scmp.ne.s32.totalorder %s310, %s311
    %p322 = scmp.eq.s32.totalorder %s24, 0
    %p323 = por %p321, %p322
    %p324 = scmp.ne.s32.totalorder %s310, %s311
    %p325 = scmp.eq.s32.totalorder %s25, 1
    %p326 = por %p324, %p325
    %p328 = scmp.ne.s32.totalorder %s311, %s327
    %p329 = scmp.eq.s32.totalorder %s25, 0
    %p330 = por %p328, %p329
    %p331 = scmp.le.s32.totalorder 1, %s19
    %p332 = scmp.lt.s32.totalorder %s19, 3
    %p333 = pnand %p331, %p332
    %p334 = pneg %p333
    // Predicated region
    $region9: #{en_conv_forward.1} parent=5 // pred_check
      _
    $region10: #{en_conv_forward.1} parent=5 // pred_check_branch
      %336 = sbr.rel (%p333) target = $region12
    $region11: #{en_conv_forward.1} parent=5 // pred_region
      %s337 = ssub.s32 %s19, 1
      // Predicated region
      $region13: #{en_conv_forward.1} parent=11 // pred_check
        %p338 = pneg %p66
      $region14: #{en_conv_forward.1} parent=11 // pred_check_branch
        %340 = sbr.rel (%p338) target = $region16
      $region15: #{en_conv_forward.1} parent=11 // pred_region
        _
      $region16: #{en_conv_forward.1} parent=11 // pred_fallthru
        _
      // Predicated region
      $region17: #{en_conv_forward.1} parent=11 // pred_check
        %p341 = pneg %p87
      $region18: #{en_conv_forward.1} parent=11 // pred_check_branch
        %343 = sbr.rel (%p341) target = $region20
      $region19: #{en_conv_forward.1} parent=11 // pred_region
        _
      $region20: #{en_conv_forward.1} parent=11 // pred_fallthru
        _
      // Predicated region
      $region21: #{en_conv_forward.1} parent=11 // pred_check
        %p344 = pneg %p108
      $region22: #{en_conv_forward.1} parent=11 // pred_check_branch
        %346 = sbr.rel (%p344) target = $region24
      $region23: #{en_conv_forward.1} parent=11 // pred_region
        _
      $region24: #{en_conv_forward.1} parent=11 // pred_fallthru
        _
      // Predicated region
      $region25: #{en_conv_forward.1} parent=11 // pred_check
        %p347 = pneg %p129
      $region26: #{en_conv_forward.1} parent=11 // pred_check_branch
        %349 = sbr.rel (%p347) target = $region28
      $region27: #{en_conv_forward.1} parent=11 // pred_region
        _
      $region28: #{en_conv_forward.1} parent=11 // pred_fallthru
        _
      // Predicated region
      $region29: #{en_conv_forward.1} parent=11 // pred_check
        %p350 = pneg %p150
      $region30: #{en_conv_forward.1} parent=11 // pred_check_branch
        %352 = sbr.rel (%p350) target = $region32
      $region31: #{en_conv_forward.1} parent=11 // pred_region
        _
      $region32: #{en_conv_forward.1} parent=11 // pred_fallthru
        _
      // Predicated region
      $region33: #{en_conv_forward.1} parent=11 // pred_check
        %p353 = pneg %p171
      $region34: #{en_conv_forward.1} parent=11 // pred_check_branch
        %355 = sbr.rel (%p353) target = $region36
      $region35: #{en_conv_forward.1} parent=11 // pred_region
        _
      $region36: #{en_conv_forward.1} parent=11 // pred_fallthru
        _
      // Predicated region
      $region37: #{en_conv_forward.1} parent=11 // pred_check
        %p356 = pneg %p192
      $region38: #{en_conv_forward.1} parent=11 // pred_check_branch
        %358 = sbr.rel (%p356) target = $region40
      $region39: #{en_conv_forward.1} parent=11 // pred_region
        _
      $region40: #{en_conv_forward.1} parent=11 // pred_fallthru
        _
      // Predicated region
      $region41: #{en_conv_forward.1} parent=11 // pred_check
        %p359 = pneg %p213
      $region42: #{en_conv_forward.1} parent=11 // pred_check_branch
        %361 = sbr.rel (%p359) target = $region44
      $region43: #{en_conv_forward.1} parent=11 // pred_region
        _
      $region44: #{en_conv_forward.1} parent=11 // pred_fallthru
        _
      // Predicated region
      $region45: #{en_conv_forward.1} parent=11 // pred_check
        %p362 = pneg %p234
      $region46: #{en_conv_forward.1} parent=11 // pred_check_branch
        %364 = sbr.rel (%p362) target = $region48
      $region47: #{en_conv_forward.1} parent=11 // pred_region
        _
      $region48: #{en_conv_forward.1} parent=11 // pred_fallthru
        _
      // Predicated region
      $region49: #{en_conv_forward.1} parent=11 // pred_check
        %p365 = pneg %p255
      $region50: #{en_conv_forward.1} parent=11 // pred_check_branch
        %367 = sbr.rel (%p365) target = $region52
      $region51: #{en_conv_forward.1} parent=11 // pred_region
        _
      $region52: #{en_conv_forward.1} parent=11 // pred_fallthru
        _
      // Predicated region
      $region53: #{en_conv_forward.1} parent=11 // pred_check
        %p368 = pneg %p276
      $region54: #{en_conv_forward.1} parent=11 // pred_check_branch
        %370 = sbr.rel (%p368) target = $region56
      $region55: #{en_conv_forward.1} parent=11 // pred_region
        _
      $region56: #{en_conv_forward.1} parent=11 // pred_fallthru
        _
      // Predicated region
      $region57: #{en_conv_forward.1} parent=11 // pred_check
        %p371 = pneg %p297
      $region58: #{en_conv_forward.1} parent=11 // pred_check_branch
        %373 = sbr.rel (%p371) target = $region60
      $region59: #{en_conv_forward.1} parent=11 // pred_region
        _
      $region60: #{en_conv_forward.1} parent=11 // pred_fallthru
        _
    $region12: #{en_conv_forward.1} parent=5 // pred_fallthru
      _
    %p374 = scmp.lt.s32.totalorder %s19, 2
    // Predicated region
    $region61: #{en_conv_forward.1} parent=5 // pred_check
      %p375 = pneg %p374
    $region62: #{en_conv_forward.1} parent=5 // pred_check_branch
      %377 = sbr.rel (%p375) target = $region64
    $region63: #{en_conv_forward.1} parent=5 // pred_region
      // Predicated region
      $region65: #{en_conv_forward.1} parent=63 // pred_check
        %p378 = pneg %p39
      $region66: #{en_conv_forward.1} parent=63 // pred_check_branch
        %380 = sbr.rel (%p378) target = $region68
      $region67: #{en_conv_forward.1} parent=63 // pred_region
        %p381 = scmp.lt.s32.totalorder %s19, 1
        %s382 = scalar_select %p381, %s19, 1
        %s383 = smul.addr %s382, 4
        %s384 = smul.addr %s383, 4
        %s385 = scalar_lea.vmem %s0, %s384
      $region68: #{en_conv_forward.1} parent=63 // pred_fallthru
        _
    $region64: #{en_conv_forward.1} parent=5 // pred_fallthru
      _
    %p386 = scmp.le.s32.totalorder 1, %s19
    %p387 = scmp.lt.s32.totalorder %s19, 3
    %p388 = pnand %p386, %p387
    %p389 = pneg %p388
    // Predicated region
    $region69: #{en_conv_forward.1} parent=5 // pred_check
      _
    $region70: #{en_conv_forward.1} parent=5 // pred_check_branch
      %391 = sbr.rel (%p388) target = $region72
    $region71: #{en_conv_forward.1} parent=5 // pred_region
      %s392 = ssub.s32 %s19, 1
      %p393 = scmp.lt.s32.totalorder %s24, 1
      %s394 = scalar_select %p393, %s24, 1
      %s395 = smul.addr %s394, 4
      %s396 = smul.addr %s395, 4
      %s397 = scalar_lea.vmem %s0, %s396
      %p398 = pneg %p45
      %p399 = pneg %p42
      %p400 = pneg %p66
      %p401 = pneg %p63
      %p402 = pneg %p87
      %p403 = pneg %p84
      %p404 = pneg %p108
      %p405 = pneg %p105
      %p406 = pneg %p129
      %p407 = pneg %p126
      %p408 = pneg %p150
      %p409 = pneg %p147
      %p410 = pneg %p171
      %p411 = pneg %p168
      %p412 = pneg %p192
      %p413 = pneg %p189
      %p414 = pneg %p213
      %p415 = pneg %p210
      %p416 = pneg %p234
      %p417 = pneg %p231
      %p418 = pneg %p255
      %p419 = pneg %p252
      %p420 = pneg %p276
      %p421 = pneg %p273
      %p422 = pneg %p297
      %p423 = pneg %p294
      %p424 = pneg %p323
      %p425 = pneg %p320
      %p426 = scmp.lt.s32.totalorder %s24, 1
      %s427 = scalar_select %p426, %s24, 1
      %s428 = smul.addr %s427, 8
      %s429 = scalar_lea.vmem %s13, %s428
      %p430 = scmp.lt.s32.totalorder %s24, 1
      %s431 = scalar_select %p430, %s24, 1
      %s432 = smul.addr %s431, 4
      %s433 = smul.addr %s432, 4
      %s434 = scalar_lea.vmem %s0, %s433
      %p435 = scmp.lt.s32.totalorder %s24, 1
      %s436 = scalar_select %p435, %s24, 1
      %s437 = smul.addr %s436, 8
      %s438 = scalar_lea.vmem %s13, %s437
      %v440 = vld [vmem:[%s434] sm:$0xf]
      %s441 = scalar_lea.vmem %s434, 4
      %v442 = vld [vmem:[%s441] sm:$0xf]
      %v443 = vmax.f32 %v440, %v442
      %s444 = scalar_lea.vmem %s434, 8
      %v445 = vld [vmem:[%s444] sm:$0xf]
      %s446 = scalar_lea.vmem %s434, 12
      %v447 = vld [vmem:[%s446] sm:$0xf]
      %v448 = vmax.f32 %v445, %v447
      %v449 = vmax.f32 %v443, %v448
      %v450 = vlaneseq
      %v451 = vand.u32 %v450, 127
      %vm452 = vcmp.lt.s32.totalorder %v451, 0
      %v453 = vsub.s32 0, %v451
      %v454 = vsel %vm452, %v453, %v451
      %v455 = vshrl.u32 %v454, 3
      %v456 = vand.u32 %v454, 7
      %v457 = vsub.s32 0, %v456
      %v458 = vsel %vm452, %v457, %v456
      %vm459 = vcmp.ne.s32.totalorder %v458, 0
      %vm460 = vcmp.lt.s32.totalorder %v458, 0
      %vm461 = vmand %vm460, %vm459
      %v462 = vadd.s32 %v458, 8
      %v463 = vsel %vm461, %v462, %v458
      %vm464 = vcmp.ne.s32.totalorder %v463, 0
      %v465 = vsel %vm464, 1, 0
      %v466 = vcvt.s32.f32 %v465
      %vm467 = vcmp.ne.s32.totalorder %v463, 7
      %v468 = vsel %vm467, 1, 0
      %v469 = vcvt.s32.f32 %v468
      %vm470 = vcmask 68608
      %471 = vst.msk [vmem:[#allocation2] sm:$0xf] %vm470, 0.0
      %vm472 = vcmask 667208
      %473 = vst.msk [vmem:[#allocation2] sm:$0xf] %vm472, 0.0
      %vm474 = vcmask 72704
      %475 = vst.msk [vmem:[#allocation3] sm:$0xff] %vm474, 0.0
      %vm476 = vcmask 671304
      %477 = vst.msk [vmem:[#allocation3] sm:$0xff] %vm476, 0.0
      %v478 = vld [vmem:[%s1] sm:$0xf]
      %480 = vset.pattern.permute.xlu0 0
      %481 = vperm.xlu0 %480, %v478
      %v482 = vpop.permute.xlu0 %481
      %v484 = vmul.f32 %v449, %v482
      %v485 = vld [vmem:[%s2] sm:$0xf]
      %487 = vset.pattern.permute.xlu0 0
      %488 = vperm.xlu0 %487, %v485
      %v489 = vpop.permute.xlu0 %488
      %v491 = vadd.f32 %v484, %v489
      %v492 = vmax.f32 %v491, 0.0
      %494 = vrot.lane.b32.xlu0 %v492, 9
      %v495 = vpop.permute.xlu0 %494
      %vm497 = vcmask 592968
      %498 = vst.msk [vmem:[#allocation2] sm:$0xf] %vm497, %v495
      %v499 = vld [vmem:[#allocation2] sm:$0xf]
      %v500 = vmul.f32 %v499, %v466
      %502 = vrot.lane.b32.xlu0 %v469, 2
      %v503 = vpop.permute.xlu0 %502
      %v505 = vmul.f32 %v499, %v503
      %507 = vrot.lane.b32.xlu0 %v466, 8
      %v508 = vpop.permute.xlu0 %507
      %v510 = vmul.f32 %v499, %v508
      %511 = vrot.lane.b32.xlu0 %v469, 10
      %v512 = vpop.permute.xlu0 %511
      %v514 = vmul.f32 %v499, %v512
      %515 = vrot.lane.b32.xlu0 %v466, 16
      %v516 = vpop.permute.xlu0 %515
      %v518 = vmul.f32 %v499, %v516
      %519 = vrot.lane.b32.xlu0 %v469, 18
      %v520 = vpop.permute.xlu0 %519
      %v522 = vmul.f32 %v499, %v520
      %v524 = vrot.slane %v499, 4
      %525 = vrot.lane.b32.xlu0 %v524, 127
      %v526 = vpop.permute.xlu0 %525
      %529 = vrot.lane.b32.xlu0 %v505, 126
      %v530 = vpop.permute.xlu0 %529
      %v533 = vrot.slane %v510, 4
      %534 = vrot.lane.b32.xlu0 %v533, 120
      %v535 = vpop.permute.xlu0 %534
      %537 = vrot.lane.b32.xlu0 %v499, 119
      %v538 = vpop.permute.xlu0 %537
      %v541 = vrot.slane %v514, 4
      %542 = vrot.lane.b32.xlu0 %v541, 118
      %v543 = vpop.permute.xlu0 %542
      %546 = vrot.lane.b32.xlu0 %v518, 112
      %v547 = vpop.permute.xlu0 %546
      %549 = vrot.lane.b32.xlu0 %v524, 111
      %v550 = vpop.permute.xlu0 %549
      %553 = vrot.lane.b32.xlu0 %v522, 110
      %v554 = vpop.permute.xlu0 %553
      %vm556 = vcmask 1043456
      %v557 = vsel %vm556, %v500, %v526
      %v558 = vsel %vm556, %v530, %v535
      %v559 = vsel %vm556, %v538, %v543
      %v560 = vsel %vm556, %v547, %v550
      %v561 = vpack.c.bf16 %v558, %v557
      %v562 = vpack.c.bf16 %v560, %v559
      %v563 = vpack.c.bf16 %v554, %v554
      %v564 = vld [vmem:[%s3] sm:$0xf]
      %v565 = vld [vmem:[%s4] sm:$0xff]
      %567 = vset.pattern.permute.xlu0 0
      %568 = vperm.xlu0 %567, %v565
      %v569 = vpop.permute.xlu0 %568
      %vm571 = vcmask 293888
      %v573 = vsel %vm571, %v564, 0
      %vm575 = vcmask 1041408
      %v577 = vsel %vm575, %v563, 0
      %579 = vmatpush.bf16.msra.mxu0 0
      %580 = vmatpush.bf16.msra.mxu0 0
      %581 = vmatpush.bf16.msra.mxu0 0
      %582 = vmatpush.bf16.msra.mxu0 0
      %583 = vmatpush.bf16.msra.mxu0 0
      %584 = vmatpush.bf16.msra.mxu0 %v577
      %585 = vmatpush.bf16.msra.mxu0 %v562
      %586 = vmatpush.bf16.msra.mxu0 %v561
      %587 = vmatmul.bf16.gmra.mxu0 %v573
      %v588 = vpop.f32.mrf.mxu0
      %v589 = vadd.f32 %v569, %v588
      %v590 = vpop.f32.mrf.mxu0
      %591 = vdwg.mxu0
      %v592 = vld [vmem:[%s9] sm:$0xf]
      %594 = vset.pattern.permute.xlu0 0
      %595 = vperm.xlu0 %594, %v592
      %v596 = vpop.permute.xlu0 %595
      %v598 = vmul.f32 %v449, %v596
      %v599 = vld [vmem:[%s10] sm:$0xf]
      %601 = vset.pattern.permute.xlu0 0
      %602 = vperm.xlu0 %601, %v599
      %v603 = vpop.permute.xlu0 %602
      %v605 = vadd.f32 %v598, %v603
      %v606 = vmax.f32 %v605, 0.0
      %608 = vrot.lane.b32.xlu0 %v606, 9
      %v609 = vpop.permute.xlu0 %608
      %611 = vst.msk [vmem:[#allocation2] sm:$0xf] %vm497, %v609
      %v612 = vld [vmem:[#allocation2] sm:$0xf]
      %v613 = vmul.f32 %v612, %v466
      %v614 = vmul.f32 %v612, %v503
      %v615 = vmul.f32 %v612, %v508
      %v616 = vmul.f32 %v612, %v512
      %v617 = vmul.f32 %v612, %v516
      %v618 = vmul.f32 %v612, %v520
      %v620 = vrot.slane %v612, 4
      %621 = vrot.lane.b32.xlu0 %v620, 127
      %v622 = vpop.permute.xlu0 %621
      %625 = vrot.lane.b32.xlu0 %v614, 126
      %v626 = vpop.permute.xlu0 %625
      %v629 = vrot.slane %v615, 4
      %630 = vrot.lane.b32.xlu0 %v629, 120
      %v631 = vpop.permute.xlu0 %630
      %633 = vrot.lane.b32.xlu0 %v612, 119
      %v634 = vpop.permute.xlu0 %633
      %v637 = vrot.slane %v616, 4
      %638 = vrot.lane.b32.xlu0 %v637, 118
      %v639 = vpop.permute.xlu0 %638
      %642 = vrot.lane.b32.xlu0 %v617, 112
      %v643 = vpop.permute.xlu0 %642
      %645 = vrot.lane.b32.xlu0 %v620, 111
      %v646 = vpop.permute.xlu0 %645
      %649 = vrot.lane.b32.xlu0 %v618, 110
      %v650 = vpop.permute.xlu0 %649
      %v652 = vsel %vm556, %v613, %v622
      %v653 = vsel %vm556, %v626, %v631
      %v654 = vsel %vm556, %v634, %v639
      %v655 = vsel %vm556, %v643, %v646
      %v656 = vpack.c.bf16 %v653, %v652
      %v657 = vpack.c.bf16 %v655, %v654
      %v658 = vpack.c.bf16 %v650, %v650
      %v659 = vld [vmem:[%s11] sm:$0xf]
      %v660 = vld [vmem:[%s12] sm:$0xff]
      %662 = vset.pattern.permute.xlu0 0
      %663 = vperm.xlu0 %662, %v660
      %v664 = vpop.permute.xlu0 %663
      %v667 = vsel %vm571, %v659, 0
      %v670 = vsel %vm575, %v658, 0
      %672 = vmatpush.bf16.msra.mxu0 0
      %673 = vmatpush.bf16.msra.mxu0 0
      %674 = vmatpush.bf16.msra.mxu0 0
      %675 = vmatpush.bf16.msra.mxu0 0
      %676 = vmatpush.bf16.msra.mxu0 0
      %677 = vmatpush.bf16.msra.mxu0 %v670
      %678 = vmatpush.bf16.msra.mxu0 %v657
      %679 = vmatpush.bf16.msra.mxu0 %v656
      %680 = vmatmul.bf16.gmra.mxu0 %v667
      %v681 = vpop.f32.mrf.mxu0
      %v682 = vadd.f32 %v664, %v681
      %v683 = vpop.f32.mrf.mxu0
      %684 = vdwg.mxu0
      %v685 = vld [vmem:[%s5] sm:$0xff]
      %687 = vset.pattern.permute.xlu0 0
      %688 = vperm.xlu0 %687, %v685
      %v689 = vpop.permute.xlu0 %688
      %v691 = vmul.f32 %v589, %v689
      %v692 = vld [vmem:[%s6] sm:$0xff]
      %694 = vset.pattern.permute.xlu0 0
      %695 = vperm.xlu0 %694, %v692
      %v696 = vpop.permute.xlu0 %695
      %v698 = vadd.f32 %v691, %v696
      %v699 = vmax.f32 %v698, 0.0
      %701 = vrot.lane.b32.xlu0 %v699, 9
      %v702 = vpop.permute.xlu0 %701
      %vm704 = vcmask 597064
      %705 = vst.msk [vmem:[#allocation3] sm:$0xff] %vm704, %v702
      %v706 = vld [vmem:[#allocation3] sm:$0xff]
      %v707 = vmul.f32 %v706, %v466
      %v708 = vmul.f32 %v706, %v503
      %v709 = vmul.f32 %v706, %v508
      %v710 = vmul.f32 %v706, %v512
      %v711 = vmul.f32 %v706, %v516
      %v712 = vmul.f32 %v706, %v520
      %714 = vrot.lane.b32.xlu0 %v706, 127
      %v715 = vpop.permute.xlu0 %714
      %718 = vrot.lane.b32.xlu0 %v708, 126
      %v719 = vpop.permute.xlu0 %718
      %722 = vrot.lane.b32.xlu0 %v709, 120
      %v723 = vpop.permute.xlu0 %722
      %725 = vrot.lane.b32.xlu0 %v706, 119
      %v726 = vpop.permute.xlu0 %725
      %729 = vrot.lane.b32.xlu0 %v710, 118
      %v730 = vpop.permute.xlu0 %729
      %733 = vrot.lane.b32.xlu0 %v711, 112
      %v734 = vpop.permute.xlu0 %733
      %736 = vrot.lane.b32.xlu0 %v706, 111
      %v737 = vpop.permute.xlu0 %736
      %740 = vrot.lane.b32.xlu0 %v712, 110
      %v741 = vpop.permute.xlu0 %740
      %v743 = vpack.c.bf16 %v715, %v707
      %v744 = vpack.c.bf16 %v723, %v719
      %v745 = vpack.c.bf16 %v730, %v726
      %v746 = vpack.c.bf16 %v737, %v734
      %v747 = vpack.c.bf16 %v741, %v741
      %v748 = vld [vmem:[%s7] sm:$0xf]
      %v749 = vld [vmem:[%s8] sm:$0xff]
      %751 = vset.pattern.permute.xlu0 0
      %752 = vperm.xlu0 %751, %v749
      %v753 = vpop.permute.xlu0 %752
      %vm755 = vcmask 588800
      %v757 = vsel %vm755, %v748, 0
      %v760 = vsel %vm556, %v747, 0
      %762 = vmatpush.bf16.msra.mxu0 0
      %763 = vmatpush.bf16.msra.mxu0 0
      %764 = vmatpush.bf16.msra.mxu0 0
      %765 = vmatpush.bf16.msra.mxu0 %v760
      %766 = vmatpush.bf16.msra.mxu0 %v746
      %767 = vmatpush.bf16.msra.mxu0 %v745
      %768 = vmatpush.bf16.msra.mxu0 %v744
      %769 = vmatpush.bf16.msra.mxu0 %v743
      %770 = vmatmul.bf16.gmra.mxu0 %v757
      %v771 = vpop.f32.mrf.mxu0
      %v772 = vadd.f32 %v753, %v771
      %v773 = vpop.f32.mrf.mxu0
      %774 = vdwg.mxu0
      %v775 = vadd.f32 %v772, %v682
      %vm776 = vcmask 523264
      %777 = vst.msk [vmem:[%s438] sm:$0xff] %vm776, %v775
      %p778 = scmp.lt.s32.totalorder %s24, 1
      %s779 = scalar_select %p778, %s24, 1
      %s780 = smul.addr %s779, 8
      %s781 = scalar_lea.vmem %s13, %s780
      // Predicated region
      $region73: #{en_conv_forward.1} parent=71 // pred_check
        %p782 = pneg %p320
      $region74: #{en_conv_forward.1} parent=71 // pred_check_branch
        %784 = sbr.rel (%p782) target = $region76
      $region75: #{en_conv_forward.1} parent=71 // pred_region
        _
      $region76: #{en_conv_forward.1} parent=71 // pred_fallthru
        _
    $region72: #{en_conv_forward.1} parent=5 // pred_fallthru
      _
    %p785 = scmp.le.s32.totalorder 2, %s19
    // Predicated region
    $region77: #{en_conv_forward.1} parent=5 // pred_check
      %p786 = pneg %p785
    $region78: #{en_conv_forward.1} parent=5 // pred_check_branch
      %788 = sbr.rel (%p786) target = $region80
    $region79: #{en_conv_forward.1} parent=5 // pred_region
      %s789 = ssub.s32 %s19, 2
      // Predicated region
      $region81: #{en_conv_forward.1} parent=79 // pred_check
        %p790 = pneg %p326
      $region82: #{en_conv_forward.1} parent=79 // pred_check_branch
        %792 = sbr.rel (%p790) target = $region84
      $region83: #{en_conv_forward.1} parent=79 // pred_region
        %p793 = scmp.lt.s32.totalorder %s25, 1
        %s794 = scalar_select %p793, %s25, 1
        %s795 = smul.addr %s794, 8
        %s796 = scalar_lea.vmem %s13, %s795
      $region84: #{en_conv_forward.1} parent=79 // pred_fallthru
        _
    $region80: #{en_conv_forward.1} parent=5 // pred_fallthru
      _
  $region6: #{en_conv_forward.1} parent=0 // loop_footer
    %s23 = sadd.s32 1, %s19
  $region7: #{en_conv_forward.1} parent=0 // loop_footer_branch
    %18 = sbr.rel target = $region3
  $region8: #{en_conv_forward.1} parent=0 // loop_exit
    _

</llo_original>
